<compile_context>
chip_gen: v7x
topology: tpu7x:2x2x1
jax: 0.10.0
libtpu: 0.0.40
codegen_flags: <defaults>
</compile_context>

<pallas_src>
import functools

import jax
import jax.numpy as jnp
import numpy as np
from jax.experimental import pallas as pl
from jax.experimental.pallas import tpu as pltpu


# ------------------------------------------------------------------ kernel ---
def spectral_enhancer_kernel(w_ref, b_ref, x_ref, o_ref, *, T):
    # w_ref: (3, M, M)  per-tap weights [x[t-1], x[t], x[t+1]], alpha pre-folded
    # b_ref: (M, 1)     bias column, alpha pre-folded
    # x_ref: (M, L)     L == T (per-batch path) or (#batches-in-block)*T (folded)
    # o_ref: (M, L)
    x = x_ref[...]                                    # (M, L) f32
    L = x.shape[1]

    # Zero-padded temporal shifts (Conv1d padding=1) via XLU lane rolls +
    # boundary masks.  t is taken mod T so masks land on per-batch edges and
    # the circular roll never leaks across batch boundaries (each block holds
    # whole batches).  pltpu.roll needs shift >= 0, hence shift = L - 1 for -1.
    t = jax.lax.broadcasted_iota(jnp.int32, (1, L), 1)
    if L != T:
        t = t % T
    x_prev = jnp.where(t == 0, 0.0, pltpu.roll(x, shift=1, axis=1))        # x[:, t-1]
    x_next = jnp.where(t == T - 1, 0.0, pltpu.roll(x, shift=L - 1, axis=1))  # x[:, t+1]

    # Three accumulating MXU dots (no (3M, L) concat slab).
    y = jnp.dot(w_ref[0], x_prev, preferred_element_type=jnp.float32)
    y = y + jnp.dot(w_ref[1], x, preferred_element_type=jnp.float32)
    y = y + jnp.dot(w_ref[2], x_next, preferred_element_type=jnp.float32)

    # alpha already folded into w/b; only the (1 - alpha) residual remains.
    o_ref[...] = (y + b_ref[...] + jnp.float32(0.7) * x).astype(o_ref.dtype)


# ----------------------------------------------------- VMEM budgeting utils ---
def _vmem_limit_bytes(M, lanes):
    """Rough per-step live VMEM: 2x in + 2x out blocks + ~5 (M,lanes) temps
    + double-buffered (3,M,M) weights.  Clamp to [16 MiB, 64 MiB] (64 MiB =
    v7x physical VMEM; well under v5e/v6e's 128 MiB)."""
    est = 9 * M * lanes * 4 + 2 * (3 * M * M * 4) + 4 * M * 4
    est = (est * 5) // 4  # headroom
    return int(min(max(est, 16 << 20), 64 << 20))


def _batches_per_block(B, T, M, budget_bytes=32 << 20):
    """Folded-path blocking: whole batches per block, lane width a multiple of
    128 and within the VMEM budget; prefer >= 2 grid steps (megacore)."""
    max_lanes = max(128, budget_bytes // (9 * M * 4))
    cands = [bb for bb in range(1, B + 1)
             if B % bb == 0 and (bb * T) % 128 == 0 and bb * T <= max_lanes]
    if not cands:
        return B                      # single full-array block (exempt from (8,128))
    multi = [bb for bb in cands if B // bb >= 2]
    return max(multi) if multi else max(cands)


# ----------------------------------------------------------------- wrapper ---
def spectral_enhancer(mel_spec, w_taps, bias_col):
    """mel_spec: (B, M, T) f32; w_taps: (3, M, M) (alpha-folded); bias_col: (M, 1)."""
    B, M, T = mel_spec.shape

    if T >= 128:
        # -------- primary path: operate on (B, M, T) directly, no transposes.
        vmem_limit = _vmem_limit_bytes(M, T)
        return pl.pallas_call(
            functools.partial(spectral_enhancer_kernel, T=T),
            out_shape=jax.ShapeDtypeStruct((B, M, T), mel_spec.dtype),
            grid_spec=pltpu.PrefetchScalarGridSpec(
                num_scalar_prefetch=0,
                grid=(B,),
                in_specs=[
                    pl.BlockSpec((3, M, M), lambda b: (0, 0, 0)),     # taps (resident)
                    pl.BlockSpec((M, 1), lambda b: (0, 0)),           # bias (resident)
                    pl.BlockSpec((None, M, T), lambda b: (b, 0, 0)),  # per-batch slab
                ],
                out_specs=pl.BlockSpec((None, M, T), lambda b: (b, 0, 0)),
            ),
            compiler_params=pltpu.CompilerParams(
                dimension_semantics=("parallel",),
                vmem_limit_bytes=vmem_limit,
            ),
        )(w_taps, bias_col, mel_spec)

    # -------- fallback path (T < 128): fold batch into the lane axis so the
    # output stays lane-dense; blocks always contain whole batches.
    L = B * T
    x2d = jnp.reshape(jnp.transpose(mel_spec, (1, 0, 2)), (M, L))
    bb = _batches_per_block(B, T, M)
    lanes = bb * T
    grid = (L // lanes,)
    vmem_limit = _vmem_limit_bytes(M, lanes)

    out2d = pl.pallas_call(
        functools.partial(spectral_enhancer_kernel, T=T),
        out_shape=jax.ShapeDtypeStruct((M, L), mel_spec.dtype),
        grid_spec=pltpu.PrefetchScalarGridSpec(
            num_scalar_prefetch=0,
            grid=grid,
            in_specs=[
                pl.BlockSpec((3, M, M), lambda i: (0, 0, 0)),   # taps (resident)
                pl.BlockSpec((M, 1), lambda i: (0, 0)),         # bias (resident)
                pl.BlockSpec((M, lanes), lambda i: (0, i)),     # lane-dense x slab
            ],
            out_specs=pl.BlockSpec((M, lanes), lambda i: (0, i)),
        ),
        compiler_params=pltpu.CompilerParams(
            dimension_semantics=("parallel",),
            vmem_limit_bytes=vmem_limit,
        ),
    )(w_taps, bias_col, x2d)

    return jnp.transpose(jnp.reshape(out2d, (M, B, T)), (1, 0, 2))


# --------------------------------------------------- parameter construction ---
def init_conv1d(key, c_out, c_in, k=3):
    """PyTorch Conv1d default init: U(-1/sqrt(fan_in), 1/sqrt(fan_in))."""
    kw, kb = jax.random.split(key)
    bound = 1.0 / np.sqrt(c_in * k)
    w = jax.random.uniform(kw, (c_out, c_in, k), jnp.float32, -bound, bound)
    b = jax.random.uniform(kb, (c_out,), jnp.float32, -bound, bound)
    return w, b


def build_fused_params(key, n_mels, alpha=0.3):
    """Pack the three per-band Conv1d weights into one (3, M, M) per-tap tensor
    (block-diagonal over low/mid/high bands), with alpha folded in."""
    c4 = n_mels // 4
    k_low, k_mid, k_high = jax.random.split(key, 3)
    w_low, b_low = init_conv1d(k_low, c4, c4)
    w_mid, b_mid = init_conv1d(k_mid, 2 * c4, 2 * c4)
    w_high, b_high = init_conv1d(k_high, c4, c4)

    W = jnp.zeros((n_mels, n_mels, 3), jnp.float32)
    W = W.at[:c4, :c4, :].set(w_low)
    W = W.at[c4:3 * c4, c4:3 * c4, :].set(w_mid)
    W = W.at[3 * c4:, 3 * c4:, :].set(w_high)

    # (3, M, M): tap k multiplies x[:, t-1+k]; alpha pre-folded (host-side, once).
    w_taps = jnp.transpose(W, (2, 0, 1)) * jnp.float32(alpha)
    bias_col = (jnp.concatenate([b_low, b_mid, b_high]) * jnp.float32(alpha))[:, None]
    band_params = (w_low, b_low, w_mid, b_mid, w_high, b_high)
    return w_taps, bias_col, band_params


# -------------------------------------------------------- pure-JAX reference ---
def reference_forward(mel_spec, band_params):
    w_low, b_low, w_mid, b_mid, w_high, b_high = band_params
    n_mels = mel_spec.shape[1]
    c4 = n_mels // 4

    def conv1d(x, w, b):  # x: (B, C, T), w: (Co, Ci, 3)
        y = jax.lax.conv_general_dilated(
            x, w, window_strides=(1,), padding=((1, 1),),
            dimension_numbers=("NCH", "OIH", "NCH"),
            precision=jax.lax.Precision.HIGHEST)
        return y + b[None, :, None]

    low = conv1d(mel_spec[:, :c4, :], w_low, b_low)
    mid = conv1d(mel_spec[:, c4:3 * c4, :], w_mid, b_mid)
    high = conv1d(mel_spec[:, 3 * c4:, :], w_high, b_high)
    enhanced = jnp.concatenate([low, mid, high], axis=1)
    return 0.3 * enhanced + 0.7 * mel_spec


# -------------------------------------------------------------------- main ---
if __name__ == "__main__":
    key = jax.random.PRNGKey(0)
    k_param, k_x1, k_x2 = jax.random.split(key, 3)

    batch, n_mels = 2, 16
    w_taps, bias_col, band_params = build_fused_params(k_param, n_mels)

    # Case 1: tiny T (< 128) -> batch-folded lane-dense fallback path.
    T_small = 8
    mel_small = jax.random.normal(k_x1, (batch, n_mels, T_small), jnp.float32)
    out_small = jax.block_until_ready(spectral_enhancer(mel_small, w_taps, bias_col))
    ref_small = jax.block_until_ready(reference_forward(mel_small, band_params))
    assert out_small.shape == (batch, n_mels, T_small)
    np.testing.assert_allclose(np.asarray(out_small), np.asarray(ref_small),
                               rtol=1e-3, atol=2e-3)

    # Case 2: T >= 128 -> primary (B, M, T) path, no HBM transposes.
    T_big = 128
    mel_big = jax.random.normal(k_x2, (batch, n_mels, T_big), jnp.float32)
    out_big = jax.block_until_ready(spectral_enhancer(mel_big, w_taps, bias_col))
    ref_big = jax.block_until_ready(reference_forward(mel_big, band_params))
    assert out_big.shape == (batch, n_mels, T_big)
    np.testing.assert_allclose(np.asarray(out_big), np.asarray(ref_big),
                               rtol=1e-3, atol=2e-3)

    print("KERNEL_OK")
</pallas_src>

<mosaic_0001>
module attributes {stable_mosaic.version = 11 : i64} {
  func.func @spectral_enhancer_kernel(%arg0: i32, %arg1: memref<3x16x16xf32, #tpu.memory_space<vmem>>, %arg2: memref<16x1xf32, #tpu.memory_space<vmem>>, %arg3: memref<16x16xf32, #tpu.memory_space<vmem>>, %arg4: memref<16x16xf32, #tpu.memory_space<vmem>>) attributes {dimension_semantics = [#tpu.dimension_semantics<parallel>], iteration_bounds = array<i64: 1>, scalar_prefetch = 0 : i64, scratch_operands = 0 : i64, tpu.core_type = #tpu.core_type<tc>, window_params = [{pipeline_mode = #tpu.pipeline_mode<synchronous>, transform_indices = @transform_0, window_bounds = array<i64: 3, 16, 16>}, {pipeline_mode = #tpu.pipeline_mode<synchronous>, transform_indices = @transform_1, window_bounds = array<i64: 16, 1>}, {transform_indices = @transform_2, window_bounds = array<i64: 16, 16>}, {transform_indices = @transform_3, window_bounds = array<i64: 16, 16>}]} {
    %c0 = arith.constant 0 : index
    %c0_0 = arith.constant 0 : index
    %0 = vector.load %arg3[%c0, %c0_0] : memref<16x16xf32, #tpu.memory_space<vmem>>, vector<16x16xf32>
    %1 = tpu.iota {dimensions = array<i32: 1>} : vector<1x16xi32>
    %c8_i32 = arith.constant 8 : i32
    %c0_i32 = arith.constant 0 : i32
    %2 = arith.cmpi eq, %c8_i32, %c0_i32 : i32
    %c1_i32 = arith.constant 1 : i32
    %3 = arith.select %2, %c1_i32, %c8_i32 : i32
    %4 = vector.broadcast %3 : i32 to vector<1x16xi32>
    %5 = arith.remsi %1, %4 : vector<1x16xi32>
    %c0_i32_1 = arith.constant 0 : i32
    %6 = vector.broadcast %c0_i32_1 : i32 to vector<1x16xi32>
    %7 = arith.cmpi ne, %5, %6 : vector<1x16xi32>
    %c0_i32_2 = arith.constant 0 : i32
    %8 = vector.broadcast %c0_i32_2 : i32 to vector<1x16xi32>
    %9 = arith.cmpi slt, %5, %8 : vector<1x16xi32>
    %c0_i32_3 = arith.constant 0 : i32
    %10 = arith.cmpi slt, %3, %c0_i32_3 : i32
    %11 = vector.broadcast %10 : i1 to vector<1x16xi1>
    %12 = vector.broadcast %11 : vector<1x16xi1> to vector<1x16xi1>
    %13 = arith.xori %9, %12 : vector<1x16xi1>
    %14 = arith.andi %13, %7 : vector<1x16xi1>
    %15 = vector.broadcast %3 : i32 to vector<1x16xi32>
    %16 = arith.addi %5, %15 : vector<1x16xi32>
    %17 = arith.select %14, %16, %5 : vector<1x16xi1>, vector<1x16xi32>
    %c0_i32_4 = arith.constant 0 : i32
    %18 = vector.broadcast %c0_i32_4 : i32 to vector<1x16xi32>
    %19 = arith.cmpi eq, %17, %18 : vector<1x16xi32>
    %c1_i32_5 = arith.constant 1 : i32
    %20 = tpu.dynamic_rotate %0 by %c1_i32_5 dim 1 : vector<16x16xf32>, i32 -> vector<16x16xf32>
    %cst = arith.constant 0.000000e+00 : f32
    %21 = vector.shape_cast %19 : vector<1x16xi1> to vector<1x16xi1>
    %22 = vector.broadcast %21 : vector<1x16xi1> to vector<16x16xi1>
    %23 = vector.broadcast %cst : f32 to vector<16x16xf32>
    %24 = arith.select %22, %23, %20 : vector<16x16xi1>, vector<16x16xf32>
    %c7_i32 = arith.constant 7 : i32
    %25 = vector.broadcast %c7_i32 : i32 to vector<1x16xi32>
    %26 = arith.cmpi eq, %17, %25 : vector<1x16xi32>
    %c15_i32 = arith.constant 15 : i32
    %27 = tpu.dynamic_rotate %0 by %c15_i32 dim 1 : vector<16x16xf32>, i32 -> vector<16x16xf32>
    %cst_6 = arith.constant 0.000000e+00 : f32
    %28 = vector.shape_cast %26 : vector<1x16xi1> to vector<1x16xi1>
    %29 = vector.broadcast %28 : vector<1x16xi1> to vector<16x16xi1>
    %30 = vector.broadcast %cst_6 : f32 to vector<16x16xf32>
    %31 = arith.select %29, %30, %27 : vector<16x16xi1>, vector<16x16xf32>
    %c0_7 = arith.constant 0 : index
    %c0_8 = arith.constant 0 : index
    %c0_9 = arith.constant 0 : index
    %32 = vector.load %arg1[%c0_7, %c0_8, %c0_9] : memref<3x16x16xf32, #tpu.memory_space<vmem>>, vector<1x16x16xf32>
    %33 = vector.shape_cast %32 : vector<1x16x16xf32> to vector<16x16xf32>
    %cst_10 = arith.constant dense<0.000000e+00> : vector<16x16xf32>
    %34 = tpu.matmul %33, %24, %cst_10 {dimension_numbers = #tpu.dot_dimension_numbers<[1], [0], [0], [1], [0, 0, 1, 1], [], []>} : vector<16x16xf32>, vector<16x16xf32>, vector<16x16xf32> -> vector<16x16xf32>
    %c1 = arith.constant 1 : index
    %c0_11 = arith.constant 0 : index
    %c0_12 = arith.constant 0 : index
    %35 = vector.load %arg1[%c1, %c0_11, %c0_12] : memref<3x16x16xf32, #tpu.memory_space<vmem>>, vector<1x16x16xf32>
    %36 = vector.shape_cast %35 : vector<1x16x16xf32> to vector<16x16xf32>
    %cst_13 = arith.constant dense<0.000000e+00> : vector<16x16xf32>
    %37 = tpu.matmul %36, %0, %cst_13 {dimension_numbers = #tpu.dot_dimension_numbers<[1], [0], [0], [1], [0, 0, 1, 1], [], []>} : vector<16x16xf32>, vector<16x16xf32>, vector<16x16xf32> -> vector<16x16xf32>
    %38 = arith.addf %34, %37 : vector<16x16xf32>
    %c2 = arith.constant 2 : index
    %c0_14 = arith.constant 0 : index
    %c0_15 = arith.constant 0 : index
    %39 = vector.load %arg1[%c2, %c0_14, %c0_15] : memref<3x16x16xf32, #tpu.memory_space<vmem>>, vector<1x16x16xf32>
    %40 = vector.shape_cast %39 : vector<1x16x16xf32> to vector<16x16xf32>
    %cst_16 = arith.constant dense<0.000000e+00> : vector<16x16xf32>
    %41 = tpu.matmul %40, %31, %cst_16 {dimension_numbers = #tpu.dot_dimension_numbers<[1], [0], [0], [1], [0, 0, 1, 1], [], []>} : vector<16x16xf32>, vector<16x16xf32>, vector<16x16xf32> -> vector<16x16xf32>
    %42 = arith.addf %38, %41 : vector<16x16xf32>
    %c0_17 = arith.constant 0 : index
    %c0_18 = arith.constant 0 : index
    %43 = vector.load %arg2[%c0_17, %c0_18] : memref<16x1xf32, #tpu.memory_space<vmem>>, vector<16x1xf32>
    %44 = vector.broadcast %43 : vector<16x1xf32> to vector<16x16xf32>
    %45 = arith.addf %42, %44 : vector<16x16xf32>
    %cst_19 = arith.constant 0.699999988 : f32
    %46 = vector.broadcast %cst_19 : f32 to vector<16x16xf32>
    %47 = arith.mulf %46, %0 : vector<16x16xf32>
    %48 = arith.addf %45, %47 : vector<16x16xf32>
    %c0_20 = arith.constant 0 : index
    %c0_21 = arith.constant 0 : index
    %49 = vector.load %arg4[%c0_20, %c0_21] : memref<16x16xf32, #tpu.memory_space<vmem>>, vector<16x16xf32>
    tpu.vector_store %arg4[%c0_20, %c0_21], %48 {strides = array<i32>} : memref<16x16xf32, #tpu.memory_space<vmem>>, vector<16x16xf32>,
    return
  }
  func.func @transform_0(%arg0: i32) -> (i32, i32, i32) {
    %c0_i32 = arith.constant 0 : i32
    %c0_i32_0 = arith.constant 0 : i32
    %c0_i32_1 = arith.constant 0 : i32
    %c0_i32_2 = arith.constant 0 : i32
    return %c0_i32, %c0_i32_0, %c0_i32_1 : i32, i32, i32
  }
  func.func @transform_1(%arg0: i32) -> (i32, i32) {
    %c0_i32 = arith.constant 0 : i32
    %c0_i32_0 = arith.constant 0 : i32
    %c0_i32_1 = arith.constant 0 : i32
    return %c0_i32, %c0_i32_0 : i32, i32
  }
  func.func @transform_2(%arg0: i32) -> (i32, i32) {
    %c0_i32 = arith.constant 0 : i32
    %c0_i32_0 = arith.constant 0 : i32
    return %c0_i32, %arg0 : i32, i32
  }
  func.func @transform_3(%arg0: i32) -> (i32, i32) {
    %c0_i32 = arith.constant 0 : i32
    %c0_i32_0 = arith.constant 0 : i32
    return %c0_i32, %arg0 : i32, i32
  }
}

</mosaic_0001>

<llo_original>
// kernel: tpu_custom_call.1
$region0: #{tpu_custom_call.1}
  #allocation0 [shape = 'u32[]', space=smem, size = 0x4, offset = 0x4, fixed_abs, tag = 'smem constant byte address 0x4 - core index']
  #allocation1 [shape = 'u32[144,128]{1,0:T(1,128)}', space=vmem, size = 0x12000, scoped, tag = 'internal scratch']
  %s0 = inlined_call_operand.hbm [shape: f32[3,16,16], index: 0, kind: input, shape index: {}]
  %s1 = inlined_call_operand.vmem [shape: f32[16,1], index: 1, kind: input, shape index: {}]
  %s2 = inlined_call_operand.vmem [shape: f32[16,16], index: 2, kind: input, shape index: {}]
  %s3 = inlined_call_operand.hbm [shape: f32[16,16], index: 3, kind: output, shape index: {}]
  %s4 = sld [smem:[#allocation0]]
  $region26: #{tpu_custom_call.1} parent=0
    _
  %s6 = ssub.s32 1, %s4
  %s7 = scalar_select 0, %s6, %s4
  $region1: #{tpu_custom_call.1} parent=0
    #allocation2 [shape = 'u8[24576]{0}', space=vmem, size = 0x6000, scoped, tag = 'input window, operand 0, single buffered']
    #allocation3 [shape = 's32[1]{0}', space=sflag, size = 0x4, scoped, tag = 'scoped memory for tpu_custom_call.1']
    #allocation4 [shape = 's32[1]{0}', space=sflag, size = 0x4, scoped, tag = 'scoped memory for tpu_custom_call.1']
    #allocation5 [shape = 'u8[8192]{0}', space=vmem, size = 0x2000, scoped, tag = 'output window, operand 0, single buffered']
    %8 = vsyncpa [#allocation3], 0
    %9 = vsyncpa [#allocation4], 0
    // Predicated region
    $region2: #{tpu_custom_call.1} parent=1 // pred_check
      _
    $region3: #{tpu_custom_call.1} parent=1 // pred_check_branch
      %11 = sbr.rel (0) target = $region5
    $region4: #{tpu_custom_call.1} parent=1 // pred_region
      %s13 = ssub.s32 768, 768
      %14 = vsyncadd [#allocation3], %s13
      %s15 = sshll.u32 [#allocation2], 4
      %s16 = int_to_ptr.vmem [resolvable:$true] %s15
      %21 = dma.hbm_to_vmem [thread:$0]  %s0, 768, %s16, [#allocation3], 128, 128, 8
    $region5: #{tpu_custom_call.1} parent=1 // pred_fallthru
      _
    // Predicated region
    $region6: #{tpu_custom_call.1} parent=1 // pred_check
      _
    $region7: #{tpu_custom_call.1} parent=1 // pred_check_branch
      %23 = sbr.rel (0) target = $region9
    $region8: #{tpu_custom_call.1} parent=1 // pred_region
      _
    $region9: #{tpu_custom_call.1} parent=1 // pred_fallthru
      _
    // Predicated region
    $region10: #{tpu_custom_call.1} parent=1 // pred_check
      _
    $region11: #{tpu_custom_call.1} parent=1 // pred_check_branch
      %25 = sbr.rel (0) target = $region13
    $region12: #{tpu_custom_call.1} parent=1 // pred_region
      _
    $region13: #{tpu_custom_call.1} parent=1 // pred_fallthru
      _
    // Predicated region
    $region14: #{tpu_custom_call.1} parent=1 // pred_check
      _
    $region15: #{tpu_custom_call.1} parent=1 // pred_check_branch
      %27 = sbr.rel (0) target = $region17
    $region16: #{tpu_custom_call.1} parent=1 // pred_region
      %28 = dma.done [#allocation3], 768
    $region17: #{tpu_custom_call.1} parent=1 // pred_fallthru
      _
    %v29 = vld [vmem:[%s2] sm:$0xff]
    %v30 = vld [vmem:[%s2 + $0x8] sm:$0xff]
    %v31 = vlaneseq
    %v32 = vand.u32 %v31, 127
    %vm33 = vcmp.lt.s32.totalorder %v32, 0
    %v34 = vsub.s32 0, %v32
    %v35 = vsel %vm33, %v34, %v32
    %v36 = vshrl.u32 %v35, 3
    %v37 = vand.u32 %v35, 7
    %v38 = vsub.s32 0, %v37
    %v39 = vsel %vm33, %v38, %v37
    %vm40 = vcmp.ne.s32.totalorder %v39, 0
    %vm41 = vcmp.lt.s32.totalorder %v39, 0
    %vm42 = vmand %vm41, %vm40
    %v43 = vadd.s32 %v39, 8
    %v44 = vsel %vm42, %v43, %v39
    %vm45 = vcmp.eq.s32.totalorder %v44, 0
    %vm46 = vcmask 1047680
    %47 = vrot.lane.b32.xlu0 %v29, 16
    %v48 = vpop.permute.xlu0 %47
    %v49 = vsel %vm46, %v48, %v29
    %50 = vrot.lane.b32.xlu0 %v30, 16
    %v51 = vpop.permute.xlu0 %50
    %v52 = vsel %vm46, %v51, %v30
    %53 = vrot.lane.b32.xlu0 %v49, 16
    %v54 = vpop.permute.xlu0 %53
    %55 = vrot.lane.b32.xlu0 %v52, 16
    %v56 = vpop.permute.xlu0 %55
    %v57 = vsel %vm46, %v54, %v29
    %v58 = vsel %vm46, %v56, %v30
    %v59 = vsel %vm45, 1, 0
    %vm60 = vcmp.eq.s32.totalorder %v59, 1
    %63 = vrot.lane.b32.xlu0 %v57, 113
    %v64 = vpop.permute.xlu0 %63
    %65 = vrot.lane.b32.xlu0 %v58, 113
    %v66 = vpop.permute.xlu0 %65
    %v69 = vsel %vm60, 0.0, %v64
    %v70 = vsel %vm60, 0.0, %v66
    %vm71 = vcmp.eq.s32.totalorder %v44, 7
    %v72 = vsel %vm71, 1, 0
    %vm73 = vcmp.eq.s32.totalorder %v72, 1
    %74 = vrot.lane.b32.xlu0 %v57, 127
    %v75 = vpop.permute.xlu0 %74
    %76 = vrot.lane.b32.xlu0 %v58, 127
    %v77 = vpop.permute.xlu0 %76
    %v80 = vsel %vm73, 0.0, %v75
    %v81 = vsel %vm73, 0.0, %v77
    %v82 = vld [vmem:[#allocation2] sm:$0xff]
    %v83 = vld [vmem:[#allocation2 + $0x8] sm:$0xff]
    %s84 = scalar_lea.vmem [#allocation2], 16
    %v85 = vld [vmem:[%s84] sm:$0xff]
    %v86 = vld [vmem:[%s84 + $0x8] sm:$0xff]
    %vm87 = vcmask 130048
    %v89 = vsel %vm87, %v85, 0
    %v92 = vsel %vm87, %v86, 0
    %94 = vmatprep.subr.mxu0 0.0
    %95 = vmatpush1.msra.mxu0 %v29
    %96 = vmatprep.subr.mxu0 0.0
    %97 = vmatpush1.msra.mxu0 %v30
    %98 = vmatprep.subr.mxu0 0.0
    %99 = vmatpush1.msra.mxu0 0.0
    %100 = vmatprep.subr.mxu0 0.0
    %101 = vmatpush1.msra.mxu0 0.0
    %102 = vmatprep.subr.mxu0 0.0
    %103 = vmatpush1.msra.mxu0 0.0
    %104 = vmatprep.subr.mxu0 0.0
    %105 = vmatpush1.msra.mxu0 0.0
    %106 = vmatprep.subr.mxu0 0.0
    %107 = vmatpush1.msra.mxu0 0.0
    %108 = vmatprep.subr.mxu0 0.0
    %109 = vmatpush1.msra.mxu0 0.0
    %110 = vmatprep.subr.mxu0 0.0
    %111 = vmatpush1.msra.mxu0 0.0
    %112 = vmatprep.subr.mxu0 0.0
    %113 = vmatpush1.msra.mxu0 0.0
    %114 = vmatprep.subr.mxu0 0.0
    %115 = vmatpush1.msra.mxu0 0.0
    %116 = vmatprep.subr.mxu0 0.0
    %117 = vmatpush1.msra.mxu0 0.0
    %118 = vmatprep.subr.mxu0 0.0
    %119 = vmatpush1.msra.mxu0 0.0
    %120 = vmatprep.subr.mxu0 0.0
    %121 = vmatpush1.msra.mxu0 0.0
    %122 = vmatprep.subr.mxu0 0.0
    %123 = vmatpush1.msra.mxu0 0.0
    %124 = vmatprep.subr.mxu0 0.0
    %125 = vmatpush1.msra.mxu0 0.0
    %126 = vmatprep.subr.mxu0 0.0
    %127 = vmatpush1.msra.mxu0 0.0
    %128 = vmatprep.subr.mxu0 0.0
    %129 = vmatpush1.msra.mxu0 0.0
    %130 = vmatprep.subr.mxu0 0.0
    %131 = vmatpush1.msra.mxu0 0.0
    %132 = vmatprep.subr.mxu0 0.0
    %133 = vmatpush1.msra.mxu0 0.0
    %134 = vmatprep.subr.mxu0 0.0
    %135 = vmatpush1.msra.mxu0 0.0
    %136 = vmatprep.subr.mxu0 0.0
    %137 = vmatpush1.msra.mxu0 0.0
    %138 = vmatprep.subr.mxu0 0.0
    %139 = vmatpush1.msra.mxu0 0.0
    %140 = vmatprep.subr.mxu0 0.0
    %141 = vmatpush1.msra.mxu0 0.0
    %142 = vmatprep.subr.mxu0 0.0
    %143 = vmatpush1.msra.mxu0 0.0
    %144 = vmatprep.subr.mxu0 0.0
    %145 = vmatpush1.msra.mxu0 0.0
    %146 = vmatprep.subr.mxu0 0.0
    %147 = vmatpush1.msra.mxu0 0.0
    %148 = vmatprep.subr.mxu0 0.0
    %149 = vmatpush1.msra.mxu0 0.0
    %150 = vmatprep.subr.mxu0 0.0
    %151 = vmatpush1.msra.mxu0 0.0
    %152 = vmatprep.subr.mxu0 0.0
    %153 = vmatpush1.msra.mxu0 0.0
    %154 = vmatprep.subr.mxu0 0.0
    %155 = vmatpush1.msra.mxu0 0.0
    %156 = vmatprep.subr.mxu0 0.0
    %157 = vmatpush1.msra.mxu0 0.0
    %158 = vmatprep.mubr.f32.mxu0 0.0
    %159 = vmatmul.mubr.f32.gmra.mrb[0].mxu0 %v89
    %v160 = vpop.f32.mrb[0].mxu0
    %v161 = vadd.f32 0.0, %v160
    %v162 = vpop.f32.mrb[0].mxu0
    %163 = vmatprep.mubr.f32.mxu0 0.0
    %164 = vmatmul.mubr.f32.gmra.mrb[0].mxu0 %v92
    %v165 = vpop.f32.mrb[0].mxu0
    %v166 = vadd.f32 0.0, %v165
    %v167 = vpop.f32.mrb[0].mxu0
    %168 = vdwg.mxu0
    %v170 = vsel %vm87, %v82, 0
    %v173 = vsel %vm87, %v83, 0
    %175 = vmatprep.subr.mxu0 0.0
    %176 = vmatpush1.msra.mxu0 %v69
    %177 = vmatprep.subr.mxu0 0.0
    %178 = vmatpush1.msra.mxu0 %v70
    %179 = vmatprep.subr.mxu0 0.0
    %180 = vmatpush1.msra.mxu0 0.0
    %181 = vmatprep.subr.mxu0 0.0
    %182 = vmatpush1.msra.mxu0 0.0
    %183 = vmatprep.subr.mxu0 0.0
    %184 = vmatpush1.msra.mxu0 0.0
    %185 = vmatprep.subr.mxu0 0.0
    %186 = vmatpush1.msra.mxu0 0.0
    %187 = vmatprep.subr.mxu0 0.0
    %188 = vmatpush1.msra.mxu0 0.0
    %189 = vmatprep.subr.mxu0 0.0
    %190 = vmatpush1.msra.mxu0 0.0
    %191 = vmatprep.subr.mxu0 0.0
    %192 = vmatpush1.msra.mxu0 0.0
    %193 = vmatprep.subr.mxu0 0.0
    %194 = vmatpush1.msra.mxu0 0.0
    %195 = vmatprep.subr.mxu0 0.0
    %196 = vmatpush1.msra.mxu0 0.0
    %197 = vmatprep.subr.mxu0 0.0
    %198 = vmatpush1.msra.mxu0 0.0
    %199 = vmatprep.subr.mxu0 0.0
    %200 = vmatpush1.msra.mxu0 0.0
    %201 = vmatprep.subr.mxu0 0.0
    %202 = vmatpush1.msra.mxu0 0.0
    %203 = vmatprep.subr.mxu0 0.0
    %204 = vmatpush1.msra.mxu0 0.0
    %205 = vmatprep.subr.mxu0 0.0
    %206 = vmatpush1.msra.mxu0 0.0
    %207 = vmatprep.subr.mxu0 0.0
    %208 = vmatpush1.msra.mxu0 0.0
    %209 = vmatprep.subr.mxu0 0.0
    %210 = vmatpush1.msra.mxu0 0.0
    %211 = vmatprep.subr.mxu0 0.0
    %212 = vmatpush1.msra.mxu0 0.0
    %213 = vmatprep.subr.mxu0 0.0
    %214 = vmatpush1.msra.mxu0 0.0
    %215 = vmatprep.subr.mxu0 0.0
    %216 = vmatpush1.msra.mxu0 0.0
    %217 = vmatprep.subr.mxu0 0.0
    %218 = vmatpush1.msra.mxu0 0.0
    %219 = vmatprep.subr.mxu0 0.0
    %220 = vmatpush1.msra.mxu0 0.0
    %221 = vmatprep.subr.mxu0 0.0
    %222 = vmatpush1.msra.mxu0 0.0
    %223 = vmatprep.subr.mxu0 0.0
    %224 = vmatpush1.msra.mxu0 0.0
    %225 = vmatprep.subr.mxu0 0.0
    %226 = vmatpush1.msra.mxu0 0.0
    %227 = vmatprep.subr.mxu0 0.0
    %228 = vmatpush1.msra.mxu0 0.0
    %229 = vmatprep.subr.mxu0 0.0
    %230 = vmatpush1.msra.mxu0 0.0
    %231 = vmatprep.subr.mxu0 0.0
    %232 = vmatpush1.msra.mxu0 0.0
    %233 = vmatprep.subr.mxu0 0.0
    %234 = vmatpush1.msra.mxu0 0.0
    %235 = vmatprep.subr.mxu0 0.0
    %236 = vmatpush1.msra.mxu0 0.0
    %237 = vmatprep.subr.mxu0 0.0
    %238 = vmatpush1.msra.mxu0 0.0
    %239 = vmatprep.mubr.f32.mxu0 0.0
    %240 = vmatmul.mubr.f32.gmra.mrb[0].mxu0 %v170
    %v241 = vpop.f32.mrb[0].mxu0
    %v242 = vadd.f32 %v161, %v241
    %v243 = vpop.f32.mrb[0].mxu0
    %244 = vmatprep.mubr.f32.mxu0 0.0
    %245 = vmatmul.mubr.f32.gmra.mrb[0].mxu0 %v173
    %v246 = vpop.f32.mrb[0].mxu0
    %v247 = vadd.f32 %v166, %v246
    %v248 = vpop.f32.mrb[0].mxu0
    %249 = vdwg.mxu0
    %s250 = scalar_lea.vmem [#allocation2], 32
    %v251 = vld [vmem:[%s250] sm:$0xff]
    %v252 = vld [vmem:[%s250 + $0x8] sm:$0xff]
    %v254 = vsel %vm87, %v251, 0
    %v257 = vsel %vm87, %v252, 0
    %259 = vmatprep.subr.mxu0 0.0
    %260 = vmatpush1.msra.mxu0 %v80
    %261 = vmatprep.subr.mxu0 0.0
    %262 = vmatpush1.msra.mxu0 %v81
    %263 = vmatprep.subr.mxu0 0.0
    %264 = vmatpush1.msra.mxu0 0.0
    %265 = vmatprep.subr.mxu0 0.0
    %266 = vmatpush1.msra.mxu0 0.0
    %267 = vmatprep.subr.mxu0 0.0
    %268 = vmatpush1.msra.mxu0 0.0
    %269 = vmatprep.subr.mxu0 0.0
    %270 = vmatpush1.msra.mxu0 0.0
    %271 = vmatprep.subr.mxu0 0.0
    %272 = vmatpush1.msra.mxu0 0.0
    %273 = vmatprep.subr.mxu0 0.0
    %274 = vmatpush1.msra.mxu0 0.0
    %275 = vmatprep.subr.mxu0 0.0
    %276 = vmatpush1.msra.mxu0 0.0
    %277 = vmatprep.subr.mxu0 0.0
    %278 = vmatpush1.msra.mxu0 0.0
    %279 = vmatprep.subr.mxu0 0.0
    %280 = vmatpush1.msra.mxu0 0.0
    %281 = vmatprep.subr.mxu0 0.0
    %282 = vmatpush1.msra.mxu0 0.0
    %283 = vmatprep.subr.mxu0 0.0
    %284 = vmatpush1.msra.mxu0 0.0
    %285 = vmatprep.subr.mxu0 0.0
    %286 = vmatpush1.msra.mxu0 0.0
    %287 = vmatprep.subr.mxu0 0.0
    %288 = vmatpush1.msra.mxu0 0.0
    %289 = vmatprep.subr.mxu0 0.0
    %290 = vmatpush1.msra.mxu0 0.0
    %291 = vmatprep.subr.mxu0 0.0
    %292 = vmatpush1.msra.mxu0 0.0
    %293 = vmatprep.subr.mxu0 0.0
    %294 = vmatpush1.msra.mxu0 0.0
    %295 = vmatprep.subr.mxu0 0.0
    %296 = vmatpush1.msra.mxu0 0.0
    %297 = vmatprep.subr.mxu0 0.0
    %298 = vmatpush1.msra.mxu0 0.0
    %299 = vmatprep.subr.mxu0 0.0
    %300 = vmatpush1.msra.mxu0 0.0
    %301 = vmatprep.subr.mxu0 0.0
    %302 = vmatpush1.msra.mxu0 0.0
    %303 = vmatprep.subr.mxu0 0.0
    %304 = vmatpush1.msra.mxu0 0.0
    %305 = vmatprep.subr.mxu0 0.0
    %306 = vmatpush1.msra.mxu0 0.0
    %307 = vmatprep.subr.mxu0 0.0
    %308 = vmatpush1.msra.mxu0 0.0
    %309 = vmatprep.subr.mxu0 0.0
    %310 = vmatpush1.msra.mxu0 0.0
    %311 = vmatprep.subr.mxu0 0.0
    %312 = vmatpush1.msra.mxu0 0.0
    %313 = vmatprep.subr.mxu0 0.0
    %314 = vmatpush1.msra.mxu0 0.0
    %315 = vmatprep.subr.mxu0 0.0
    %316 = vmatpush1.msra.mxu0 0.0
    %317 = vmatprep.subr.mxu0 0.0
    %318 = vmatpush1.msra.mxu0 0.0
    %319 = vmatprep.subr.mxu0 0.0
    %320 = vmatpush1.msra.mxu0 0.0
    %321 = vmatprep.subr.mxu0 0.0
    %322 = vmatpush1.msra.mxu0 0.0
    %323 = vmatprep.mubr.f32.mxu0 0.0
    %324 = vmatmul.mubr.f32.gmra.mrb[0].mxu0 %v254
    %v325 = vpop.f32.mrb[0].mxu0
    %v326 = vadd.f32 0.0, %v325
    %v327 = vpop.f32.mrb[0].mxu0
    %328 = vmatprep.mubr.f32.mxu0 0.0
    %329 = vmatmul.mubr.f32.gmra.mrb[0].mxu0 %v257
    %v330 = vpop.f32.mrb[0].mxu0
    %v331 = vadd.f32 0.0, %v330
    %v332 = vpop.f32.mrb[0].mxu0
    %333 = vdwg.mxu0
    %v334 = vadd.f32 %v242, %v326
    %v335 = vadd.f32 %v247, %v331
    %v336 = vld [vmem:[%s1] sm:$0xff]
    %v337 = vld [vmem:[%s1 + $0x8] sm:$0xff]
    %339 = vset.pattern.permute.xlu0 0
    %340 = vperm.xlu0 %339, %v336
    %v341 = vpop.permute.xlu0 %340
    %344 = vset.pattern.permute.xlu0 0
    %345 = vperm.xlu0 %344, %v337
    %v346 = vpop.permute.xlu0 %345
    %v348 = vadd.f32 %v334, %v341
    %v349 = vadd.f32 %v335, %v346
    %v350 = vmul.f32 %v29, 0.7
    %v351 = vmul.f32 %v30, 0.7
    %v352 = vadd.f32 %v348, %v350
    %v353 = vadd.f32 %v349, %v351
    %354 = vst.msk [vmem:[#allocation5] sm:$0xff] %vm87, %v352
    %355 = vst.msk [vmem:[#allocation5 + $0x8] sm:$0xff] %vm87, %v353
    // Predicated region
    $region18: #{tpu_custom_call.1} parent=1 // pred_check
      _
    $region19: #{tpu_custom_call.1} parent=1 // pred_check_branch
      %357 = sbr.rel (0) target = $region21
    $region20: #{tpu_custom_call.1} parent=1 // pred_region
      %s359 = ssub.s32 256, 256
      %360 = vsyncadd [#allocation4], %s359
      %s361 = sshll.u32 [#allocation5], 4
      %s362 = int_to_ptr.vmem [resolvable:$true] %s361
      %367 = dma.vmem_to_hbm [thread:$0]  %s362, 256, %s3, [#allocation4], 128, 128, 8
    $region21: #{tpu_custom_call.1} parent=1 // pred_fallthru
      _
    // Predicated region
    $region22: #{tpu_custom_call.1} parent=1 // pred_check
      _
    $region23: #{tpu_custom_call.1} parent=1 // pred_check_branch
      %369 = sbr.rel (0) target = $region25
    $region24: #{tpu_custom_call.1} parent=1 // pred_region
      %370 = dma.done [#allocation4], 256
    $region25: #{tpu_custom_call.1} parent=1 // pred_fallthru
      _
    %371 = vsyncpa [#allocation3], 1
    %372 = vsyncpa [#allocation4], 1

</llo_original>
